<compile_context>
chip_gen: v7x
topology: tpu7x:2x2x1
jax: 0.10.0
libtpu: 0.0.40
codegen_flags: <defaults>
</compile_context>

<pallas_src>
import functools

import jax
import jax.numpy as jnp
from jax.experimental import pallas as pl
from jax.experimental.pallas import tpu as pltpu

_LANE = 128
_NEG_BIAS = -1e30  # finite large-negative pad bias (avoids -inf - -inf -> NaN)


def _round_up(x, m):
    return ((x + m - 1) // m) * m


def _actor_kernel(x_ref, w1_ref, b1_ref, w2_ref, b2_ref, w3_ref, b3_ref, p_ref):
    # state arrives f32; cast to bf16 in-kernel (VPU work hidden under the
    # matmuls) so the wrapper needs no per-call convert op.
    x = x_ref[...].astype(jnp.bfloat16)                             # (tb, obs)

    # fc1 + ReLU  (bf16 MXU inputs, f32 accumulate / elementwise).
    h1 = jnp.dot(x, w1_ref[...], preferred_element_type=jnp.float32) + b1_ref[...]
    h1 = jnp.maximum(h1, 0.0)

    # fc2 + ReLU.
    h2 = jnp.dot(h1.astype(jnp.bfloat16), w2_ref[...],
                 preferred_element_type=jnp.float32) + b2_ref[...]
    h2 = jnp.maximum(h2, 0.0)

    # act_p head (action axis zero-padded to 128 lanes, pad bias = -1e30 so
    # padded columns get exactly zero probability) + numerically-stable softmax.
    logits = jnp.dot(h2.astype(jnp.bfloat16), w3_ref[...],
                     preferred_element_type=jnp.float32) + b3_ref[...]
    m = jnp.max(logits, axis=-1, keepdims=True)
    e = jnp.exp(logits - m)
    s = jnp.sum(e, axis=-1, keepdims=True)
    # Plain f32 divide: keeps rows summing to 1 tightly (approx reciprocal
    # would loosen row sums to ~1e-3 relative).
    p_ref[...] = e / s


def init_params(key, obs_dim, action_size, hidden_size=300):
    """nn.Linear-style U(-1/sqrt(fan_in), 1/sqrt(fan_in)) init.

    Weights are stored pre-transposed as (in, out); biases as (1, out)."""
    ks = jax.random.split(key, 6)

    def lin(kw, kb, fan_in, fan_out):
        bound = 1.0 / jnp.sqrt(jnp.float32(fan_in))
        w = jax.random.uniform(kw, (fan_in, fan_out), jnp.float32, -bound, bound)
        b = jax.random.uniform(kb, (1, fan_out), jnp.float32, -bound, bound)
        return w, b

    w1, b1 = lin(ks[0], ks[1], obs_dim, hidden_size)
    w2, b2 = lin(ks[2], ks[3], hidden_size, hidden_size)
    w3, b3 = lin(ks[4], ks[5], hidden_size, action_size)
    return {"w1": w1, "b1": b1, "w2": w2, "b2": b2, "w3": w3, "b3": b3}


def prepare_params(params):
    """One-time cast + lane padding of the parameters (NOT on the per-call path).

    hidden is zero-padded to a multiple of 128 (pad channels stay exactly 0
    through ReLU and contribute nothing downstream -> bit-identical results).
    The action axis is zero-padded to 128 columns with -1e30 pad biases so the
    padded logits get exactly zero probability after softmax."""
    w1, b1 = params["w1"], params["b1"]
    w2, b2 = params["w2"], params["b2"]
    w3, b3 = params["w3"], params["b3"]
    obs, hid = w1.shape
    act = w3.shape[1]
    hid_p = _round_up(hid, _LANE)
    act_p = _round_up(act, _LANE)

    w1p = jnp.zeros((obs, hid_p), jnp.bfloat16).at[:, :hid].set(w1.astype(jnp.bfloat16))
    b1p = jnp.zeros((1, hid_p), jnp.float32).at[:, :hid].set(b1.astype(jnp.float32))
    w2p = jnp.zeros((hid_p, hid_p), jnp.bfloat16).at[:hid, :hid].set(w2.astype(jnp.bfloat16))
    b2p = jnp.zeros((1, hid_p), jnp.float32).at[:, :hid].set(b2.astype(jnp.float32))
    w3p = jnp.zeros((hid_p, act_p), jnp.bfloat16).at[:hid, :act].set(w3.astype(jnp.bfloat16))
    b3p = jnp.full((1, act_p), _NEG_BIAS, jnp.float32).at[:, :act].set(b3.astype(jnp.float32))
    return {"w1": w1p, "b1": b1p, "w2": w2p, "b2": b2p, "w3": w3p, "b3": b3p}


@functools.partial(jax.jit, static_argnames=("action_size", "tile_b"))
def baseline_discrete_actor(state, prepped, *, action_size, tile_b=2048):
    """Full MLP + softmax in a single Pallas kernel, tiled over the batch.

    state:   (B, obs_dim) float32
    prepped: output of prepare_params() (bf16 lane-padded weights, f32 biases)
    returns: (B, action_size) float32 probabilities (rows sum to 1)."""
    B, obs_dim = state.shape
    hid_p = prepped["w1"].shape[1]
    act_p = prepped["w3"].shape[1]
    obs_l = _round_up(obs_dim, _LANE)  # lane footprint of the state tile in VMEM

    # ---- VMEM footprint model (bytes) -------------------------------------
    # resident weights (bf16, default double-buffered) + biases (f32)
    weights_bytes = 2 * 2 * (obs_dim * hid_p + hid_p * hid_p + hid_p * act_p) \
        + 2 * 4 * (2 * hid_p + act_p)
    # per-batch-row: double-buffered f32 state/out tiles + f32/bf16 temporaries
    per_row_bytes = 8 * obs_l + 12 * hid_p + 20 * act_p
    vmem_budget = 40 << 20  # keep well under the 48 MiB limit we request

    # ---- batch tile: big (few grid steps), but >=2 steps for v7x megacore --
    B16 = _round_up(max(B, 16), 16)
    half = _round_up(B16 // 2, 16)                       # ensures >=2 grid steps
    cap_rows = max(16, (vmem_budget - weights_bytes) // per_row_bytes)
    tb = min(tile_b, half, cap_rows)
    tb = max(16, (tb // 16) * 16)                        # bf16 sublane packing
    Bp = _round_up(B, tb)
    if Bp != B:
        state = jnp.pad(state, ((0, Bp - B), (0, 0)))
    grid = (Bp // tb,)

    vmem_bytes = int(min(48 << 20,
                         max(24 << 20, 2 * (weights_bytes + tb * per_row_bytes))))

    # Weights/biases: constant index_map -> resident in VMEM across grid steps.
    def resident(shape):
        return pl.BlockSpec(shape, lambda i: (0,) * len(shape))

    probs = pl.pallas_call(
        _actor_kernel,
        out_shape=jax.ShapeDtypeStruct((Bp, act_p), jnp.float32),
        grid=grid,
        in_specs=[
            pl.BlockSpec((tb, obs_dim), lambda i: (i, 0)),   # state: tiled over batch
            resident((obs_dim, hid_p)),
            resident((1, hid_p)),
            resident((hid_p, hid_p)),
            resident((1, hid_p)),
            resident((hid_p, act_p)),
            resident((1, act_p)),
        ],
        out_specs=pl.BlockSpec((tb, act_p), lambda i: (i, 0)),  # lane-dense slab
        compiler_params=pltpu.CompilerParams(
            dimension_semantics=("parallel",),
            vmem_limit_bytes=vmem_bytes,
        ),
    )(state, prepped["w1"], prepped["b1"], prepped["w2"], prepped["b2"],
      prepped["w3"], prepped["b3"])

    return probs[:B, :action_size]


def _reference(state, p):
    """Pure-JAX reference with the same bf16-matmul / f32-elementwise split."""
    x = state.astype(jnp.bfloat16)
    h1 = jnp.maximum(
        jnp.dot(x, p["w1"].astype(jnp.bfloat16),
                preferred_element_type=jnp.float32) + p["b1"], 0.0)
    h2 = jnp.maximum(
        jnp.dot(h1.astype(jnp.bfloat16), p["w2"].astype(jnp.bfloat16),
                preferred_element_type=jnp.float32) + p["b2"], 0.0)
    logits = jnp.dot(h2.astype(jnp.bfloat16), p["w3"].astype(jnp.bfloat16),
                     preferred_element_type=jnp.float32) + p["b3"]
    return jax.nn.softmax(logits, axis=1)


if __name__ == "__main__":
    key = jax.random.PRNGKey(0)
    k_state, k_params, k_state2, k_params2 = jax.random.split(key, 4)

    # Small-shape check (module-style sizes kept small).
    B, obs_dim, action_size, hidden_size = 2, 16, 6, 32
    state = jax.random.normal(k_state, (B, obs_dim), dtype=jnp.float32)
    params = init_params(k_params, obs_dim, action_size, hidden_size)
    prepped = prepare_params(params)            # one-time cast + pad (off hot path)

    probs = jax.block_until_ready(
        baseline_discrete_actor(state, prepped, action_size=action_size))
    ref = _reference(state, params)
    assert probs.shape == (B, action_size)
    assert jnp.allclose(jnp.sum(probs, axis=1), 1.0, atol=1e-5)
    assert jnp.allclose(probs, ref, atol=1e-4, rtol=1e-4)

    # Larger-batch check: default hidden_size=300; exercises padding of
    # hidden/action lanes and the 2-step "parallel" grid (megacore on v7x).
    B2, obs2, act2 = 1024, 17, 6
    state2 = jax.random.normal(k_state2, (B2, obs2), dtype=jnp.float32)
    params2 = init_params(k_params2, obs2, act2, hidden_size=300)
    prepped2 = prepare_params(params2)
    probs2 = jax.block_until_ready(
        baseline_discrete_actor(state2, prepped2, action_size=act2))
    ref2 = _reference(state2, params2)
    assert probs2.shape == (B2, act2)
    assert jnp.allclose(jnp.sum(probs2, axis=1), 1.0, atol=1e-5)
    assert jnp.allclose(probs2, ref2, atol=1e-4, rtol=1e-4)

    # TODO(synk): pyd.Categorical(probs) itself (sampling/log_prob) is a
    # distribution object, not a tensor op; the kernel returns its parameters.
    print("KERNEL_OK")
</pallas_src>

<mosaic_0001>
module attributes {stable_mosaic.version = 11 : i64} {
  func.func @_actor_kernel(%arg0: i32, %arg1: memref<16x16xf32, #tpu.memory_space<vmem>>, %arg2: memref<16x128xbf16, #tpu.memory_space<vmem>>, %arg3: memref<1x128xf32, #tpu.memory_space<vmem>>, %arg4: memref<128x128xbf16, #tpu.memory_space<vmem>>, %arg5: memref<1x128xf32, #tpu.memory_space<vmem>>, %arg6: memref<128x128xbf16, #tpu.memory_space<vmem>>, %arg7: memref<1x128xf32, #tpu.memory_space<vmem>>, %arg8: memref<16x128xf32, #tpu.memory_space<vmem>>) attributes {dimension_semantics = [#tpu.dimension_semantics<parallel>], iteration_bounds = array<i64: 1>, scalar_prefetch = 0 : i64, scratch_operands = 0 : i64, tpu.core_type = #tpu.core_type<tc>, window_params = [{transform_indices = @transform_0, window_bounds = array<i64: 16, 16>}, {pipeline_mode = #tpu.pipeline_mode<synchronous>, transform_indices = @transform_1, window_bounds = array<i64: 16, 128>}, {pipeline_mode = #tpu.pipeline_mode<synchronous>, transform_indices = @transform_2, window_bounds = array<i64: 1, 128>}, {pipeline_mode = #tpu.pipeline_mode<synchronous>, transform_indices = @transform_3, window_bounds = array<i64: 128, 128>}, {pipeline_mode = #tpu.pipeline_mode<synchronous>, transform_indices = @transform_4, window_bounds = array<i64: 1, 128>}, {pipeline_mode = #tpu.pipeline_mode<synchronous>, transform_indices = @transform_5, window_bounds = array<i64: 128, 128>}, {pipeline_mode = #tpu.pipeline_mode<synchronous>, transform_indices = @transform_6, window_bounds = array<i64: 1, 128>}, {transform_indices = @transform_7, window_bounds = array<i64: 16, 128>}]} {
    %c0 = arith.constant 0 : index
    %c0_0 = arith.constant 0 : index
    %0 = vector.load %arg1[%c0, %c0_0] : memref<16x16xf32, #tpu.memory_space<vmem>>, vector<16x16xf32>
    %1 = arith.truncf %0 : vector<16x16xf32> to vector<16x16xbf16>
    %c0_1 = arith.constant 0 : index
    %c0_2 = arith.constant 0 : index
    %2 = vector.load %arg2[%c0_1, %c0_2] : memref<16x128xbf16, #tpu.memory_space<vmem>>, vector<16x128xbf16>
    %cst = arith.constant dense<0.000000e+00> : vector<16x128xf32>
    %3 = tpu.matmul %1, %2, %cst {dimension_numbers = #tpu.dot_dimension_numbers<[1], [0], [0], [1], [0, 0, 1, 1], [], []>} : vector<16x16xbf16>, vector<16x128xbf16>, vector<16x128xf32> -> vector<16x128xf32>
    %c0_3 = arith.constant 0 : index
    %c0_4 = arith.constant 0 : index
    %4 = vector.load %arg3[%c0_3, %c0_4] : memref<1x128xf32, #tpu.memory_space<vmem>>, vector<1x128xf32>
    %5 = vector.broadcast %4 : vector<1x128xf32> to vector<16x128xf32>
    %6 = arith.addf %3, %5 : vector<16x128xf32>
    %cst_5 = arith.constant 0.000000e+00 : f32
    %7 = vector.broadcast %cst_5 : f32 to vector<16x128xf32>
    %8 = arith.maximumf %6, %7 : vector<16x128xf32>
    %9 = arith.truncf %8 : vector<16x128xf32> to vector<16x128xbf16>
    %c0_6 = arith.constant 0 : index
    %c0_7 = arith.constant 0 : index
    %10 = vector.load %arg4[%c0_6, %c0_7] : memref<128x128xbf16, #tpu.memory_space<vmem>>, vector<128x128xbf16>
    %cst_8 = arith.constant dense<0.000000e+00> : vector<16x128xf32>
    %11 = tpu.matmul %9, %10, %cst_8 {dimension_numbers = #tpu.dot_dimension_numbers<[1], [0], [0], [1], [0, 0, 1, 1], [], []>} : vector<16x128xbf16>, vector<128x128xbf16>, vector<16x128xf32> -> vector<16x128xf32>
    %c0_9 = arith.constant 0 : index
    %c0_10 = arith.constant 0 : index
    %12 = vector.load %arg5[%c0_9, %c0_10] : memref<1x128xf32, #tpu.memory_space<vmem>>, vector<1x128xf32>
    %13 = vector.broadcast %12 : vector<1x128xf32> to vector<16x128xf32>
    %14 = arith.addf %11, %13 : vector<16x128xf32>
    %cst_11 = arith.constant 0.000000e+00 : f32
    %15 = vector.broadcast %cst_11 : f32 to vector<16x128xf32>
    %16 = arith.maximumf %14, %15 : vector<16x128xf32>
    %17 = arith.truncf %16 : vector<16x128xf32> to vector<16x128xbf16>
    %c0_12 = arith.constant 0 : index
    %c0_13 = arith.constant 0 : index
    %18 = vector.load %arg6[%c0_12, %c0_13] : memref<128x128xbf16, #tpu.memory_space<vmem>>, vector<128x128xbf16>
    %cst_14 = arith.constant dense<0.000000e+00> : vector<16x128xf32>
    %19 = tpu.matmul %17, %18, %cst_14 {dimension_numbers = #tpu.dot_dimension_numbers<[1], [0], [0], [1], [0, 0, 1, 1], [], []>} : vector<16x128xbf16>, vector<128x128xbf16>, vector<16x128xf32> -> vector<16x128xf32>
    %c0_15 = arith.constant 0 : index
    %c0_16 = arith.constant 0 : index
    %20 = vector.load %arg7[%c0_15, %c0_16] : memref<1x128xf32, #tpu.memory_space<vmem>>, vector<1x128xf32>
    %21 = vector.broadcast %20 : vector<1x128xf32> to vector<16x128xf32>
    %22 = arith.addf %19, %21 : vector<16x128xf32>
    %cst_17 = arith.constant dense<0xFF800000> : vector<16xf32>
    %23 = vector.multi_reduction <maximumf>, %22, %cst_17 [1] : vector<16x128xf32> to vector<16xf32>
    %24 = vector.shape_cast %23 : vector<16xf32> to vector<16x1xf32>
    %25 = vector.broadcast %24 : vector<16x1xf32> to vector<16x128xf32>
    %26 = arith.subf %22, %25 : vector<16x128xf32>
    %27 = math.exp %26 : vector<16x128xf32>
    %cst_18 = arith.constant dense<0.000000e+00> : vector<16xf32>
    %28 = vector.multi_reduction <add>, %27, %cst_18 [1] : vector<16x128xf32> to vector<16xf32>
    %29 = vector.shape_cast %28 : vector<16xf32> to vector<16x1xf32>
    %30 = vector.broadcast %29 : vector<16x1xf32> to vector<16x128xf32>
    %31 = arith.divf %27, %30 : vector<16x128xf32>
    %c0_19 = arith.constant 0 : index
    %c0_20 = arith.constant 0 : index
    %32 = vector.load %arg8[%c0_19, %c0_20] : memref<16x128xf32, #tpu.memory_space<vmem>>, vector<16x128xf32>
    tpu.vector_store %arg8[%c0_19, %c0_20], %31 {strides = array<i32>} : memref<16x128xf32, #tpu.memory_space<vmem>>, vector<16x128xf32>,
    return
  }
  func.func @transform_0(%arg0: i32) -> (i32, i32) {
    %c0_i32 = arith.constant 0 : i32
    %c0_i32_0 = arith.constant 0 : i32
    return %arg0, %c0_i32 : i32, i32
  }
  func.func @transform_1(%arg0: i32) -> (i32, i32) {
    %c0_i32 = arith.constant 0 : i32
    %c0_i32_0 = arith.constant 0 : i32
    %c0_i32_1 = arith.constant 0 : i32
    return %c0_i32, %c0_i32_0 : i32, i32
  }
  func.func @transform_2(%arg0: i32) -> (i32, i32) {
    %c0_i32 = arith.constant 0 : i32
    %c0_i32_0 = arith.constant 0 : i32
    %c0_i32_1 = arith.constant 0 : i32
    return %c0_i32, %c0_i32_0 : i32, i32
  }
  func.func @transform_3(%arg0: i32) -> (i32, i32) {
    %c0_i32 = arith.constant 0 : i32
    %c0_i32_0 = arith.constant 0 : i32
    %c0_i32_1 = arith.constant 0 : i32
    return %c0_i32, %c0_i32_0 : i32, i32
  }
  func.func @transform_4(%arg0: i32) -> (i32, i32) {
    %c0_i32 = arith.constant 0 : i32
    %c0_i32_0 = arith.constant 0 : i32
    %c0_i32_1 = arith.constant 0 : i32
    return %c0_i32, %c0_i32_0 : i32, i32
  }
  func.func @transform_5(%arg0: i32) -> (i32, i32) {
    %c0_i32 = arith.constant 0 : i32
    %c0_i32_0 = arith.constant 0 : i32
    %c0_i32_1 = arith.constant 0 : i32
    return %c0_i32, %c0_i32_0 : i32, i32
  }
  func.func @transform_6(%arg0: i32) -> (i32, i32) {
    %c0_i32 = arith.constant 0 : i32
    %c0_i32_0 = arith.constant 0 : i32
    %c0_i32_1 = arith.constant 0 : i32
    return %c0_i32, %c0_i32_0 : i32, i32
  }
  func.func @transform_7(%arg0: i32) -> (i32, i32) {
    %c0_i32 = arith.constant 0 : i32
    %c0_i32_0 = arith.constant 0 : i32
    return %arg0, %c0_i32 : i32, i32
  }
}

</mosaic_0001>

<llo_original>
// kernel: baseline_discrete_actor.1
$region0: #{baseline_discrete_actor.1}
  #allocation0 [shape = 'u32[]', space=smem, size = 0x4, offset = 0x4, fixed_abs, tag = 'smem constant byte address 0x4 - core index']
  #allocation1 [shape = 'u32[144,128]{1,0:T(1,128)}', space=vmem, size = 0x12000, scoped, tag = 'internal scratch']
  %s0 = inlined_call_operand.vmem [shape: f32[16,16], index: 0, kind: input, shape index: {}]
  %s1 = inlined_call_operand.vmem [shape: bf16[16,128], index: 1, kind: input, shape index: {}]
  %s2 = inlined_call_operand.vmem [shape: f32[1,128], index: 2, kind: input, shape index: {}]
  %s3 = inlined_call_operand.hbm [shape: bf16[128,128], index: 3, kind: input, shape index: {}]
  %s4 = inlined_call_operand.vmem [shape: f32[1,128], index: 4, kind: input, shape index: {}]
  %s5 = inlined_call_operand.hbm [shape: bf16[128,128], index: 5, kind: input, shape index: {}]
  %s6 = inlined_call_operand.vmem [shape: f32[1,128], index: 6, kind: input, shape index: {}]
  %s7 = inlined_call_operand.vmem [shape: f32[16,128], index: 7, kind: output, shape index: {}]
  %s8 = sld [smem:[#allocation0]]
  $region46: #{baseline_discrete_actor.1} parent=0
    _
  %s10 = ssub.s32 1, %s8
  %s11 = scalar_select 0, %s10, %s8
  $region1: #{baseline_discrete_actor.1} parent=0
    #allocation2 [shape = 'u8[32768]{0}', space=vmem, size = 0x8000, scoped, tag = 'input window, operand 3, single buffered']
    #allocation3 [shape = 's32[1]{0}', space=sflag, size = 0x4, scoped, tag = 'scoped memory for baseline_discrete_actor.1']
    #allocation4 [shape = 'u8[32768]{0}', space=vmem, size = 0x8000, scoped, tag = 'input window, operand 5, single buffered']
    #allocation5 [shape = 's32[1]{0}', space=sflag, size = 0x4, scoped, tag = 'scoped memory for baseline_discrete_actor.1']
    %12 = vsyncpa [#allocation3], 0
    %13 = vsyncpa [#allocation5], 0
    // Predicated region
    $region2: #{baseline_discrete_actor.1} parent=1 // pred_check
      _
    $region3: #{baseline_discrete_actor.1} parent=1 // pred_check_branch
      %15 = sbr.rel (0) target = $region5
    $region4: #{baseline_discrete_actor.1} parent=1 // pred_region
      _
    $region5: #{baseline_discrete_actor.1} parent=1 // pred_fallthru
      _
    // Predicated region
    $region6: #{baseline_discrete_actor.1} parent=1 // pred_check
      _
    $region7: #{baseline_discrete_actor.1} parent=1 // pred_check_branch
      %17 = sbr.rel (0) target = $region9
    $region8: #{baseline_discrete_actor.1} parent=1 // pred_region
      _
    $region9: #{baseline_discrete_actor.1} parent=1 // pred_fallthru
      _
    // Predicated region
    $region10: #{baseline_discrete_actor.1} parent=1 // pred_check
      _
    $region11: #{baseline_discrete_actor.1} parent=1 // pred_check_branch
      %19 = sbr.rel (0) target = $region13
    $region12: #{baseline_discrete_actor.1} parent=1 // pred_region
      _
    $region13: #{baseline_discrete_actor.1} parent=1 // pred_fallthru
      _
    // Predicated region
    $region14: #{baseline_discrete_actor.1} parent=1 // pred_check
      _
    $region15: #{baseline_discrete_actor.1} parent=1 // pred_check_branch
      %21 = sbr.rel (0) target = $region17
    $region16: #{baseline_discrete_actor.1} parent=1 // pred_region
      %s23 = ssub.s32 1024, 1024
      %24 = vsyncadd [#allocation3], %s23
      %s25 = sshll.u32 [#allocation2], 4
      %s26 = int_to_ptr.vmem [resolvable:$true] %s25
      %31 = dma.hbm_to_vmem [thread:$0]  %s3, 1024, %s26, [#allocation3], 64, 64, 4
    $region17: #{baseline_discrete_actor.1} parent=1 // pred_fallthru
      _
    // Predicated region
    $region18: #{baseline_discrete_actor.1} parent=1 // pred_check
      _
    $region19: #{baseline_discrete_actor.1} parent=1 // pred_check_branch
      %33 = sbr.rel (0) target = $region21
    $region20: #{baseline_discrete_actor.1} parent=1 // pred_region
      _
    $region21: #{baseline_discrete_actor.1} parent=1 // pred_fallthru
      _
    // Predicated region
    $region22: #{baseline_discrete_actor.1} parent=1 // pred_check
      _
    $region23: #{baseline_discrete_actor.1} parent=1 // pred_check_branch
      %35 = sbr.rel (0) target = $region25
    $region24: #{baseline_discrete_actor.1} parent=1 // pred_region
      %s37 = ssub.s32 1024, 1024
      %38 = vsyncadd [#allocation5], %s37
      %s39 = sshll.u32 [#allocation4], 4
      %s40 = int_to_ptr.vmem [resolvable:$true] %s39
      %45 = dma.hbm_to_vmem [thread:$0]  %s5, 1024, %s40, [#allocation5], 64, 64, 4
    $region25: #{baseline_discrete_actor.1} parent=1 // pred_fallthru
      _
    // Predicated region
    $region26: #{baseline_discrete_actor.1} parent=1 // pred_check
      _
    $region27: #{baseline_discrete_actor.1} parent=1 // pred_check_branch
      %47 = sbr.rel (0) target = $region29
    $region28: #{baseline_discrete_actor.1} parent=1 // pred_region
      _
    $region29: #{baseline_discrete_actor.1} parent=1 // pred_fallthru
      _
    // Predicated region
    $region30: #{baseline_discrete_actor.1} parent=1 // pred_check
      _
    $region31: #{baseline_discrete_actor.1} parent=1 // pred_check_branch
      %49 = sbr.rel (0) target = $region33
    $region32: #{baseline_discrete_actor.1} parent=1 // pred_region
      %50 = dma.done [#allocation3], 1024
    $region33: #{baseline_discrete_actor.1} parent=1 // pred_fallthru
      _
    // Predicated region
    $region34: #{baseline_discrete_actor.1} parent=1 // pred_check
      _
    $region35: #{baseline_discrete_actor.1} parent=1 // pred_check_branch
      %52 = sbr.rel (0) target = $region37
    $region36: #{baseline_discrete_actor.1} parent=1 // pred_region
      %53 = dma.done [#allocation5], 1024
    $region37: #{baseline_discrete_actor.1} parent=1 // pred_fallthru
      _
    %v55 = vld [vmem:[%s0] sm:$0xff]
    %v56 = vld [vmem:[%s0 + $0x8] sm:$0xff]
    %v57 = vpack.c.bf16 %v56, %v55
    %v58 = vld [vmem:[%s1] sm:$0xf]
    %v59 = vld [vmem:[%s1 + $0x4] sm:$0xf]
    %v60 = vld [vmem:[%s2] sm:$0x1]
    %v62 = vlaneseq
    %v63 = vshrl.u32 %v62, 7
    %v64 = vsub.s32 0, %v63
    %v65 = vrot.slane %v60, %v64
    %v69 = vunpack.c.l.b16 %v58
    %v70 = vunpack.c.l.b16 %v59
    %v71 = vpack.c.b16 %v70, %v69
    %vm73 = vcmask 130048
    %v75 = vsel %vm73, %v57, 0
    %77 = vmatprep.subr.bf16.mxu0 0
    %78 = vmatpush1.bf16.msra.mxu0 %v71
    %79 = vmatprep.subr.bf16.mxu0 0
    %80 = vmatpush1.bf16.msra.mxu0 0
    %81 = vmatprep.subr.bf16.mxu0 0
    %82 = vmatpush1.bf16.msra.mxu0 0
    %83 = vmatprep.subr.bf16.mxu0 0
    %84 = vmatpush1.bf16.msra.mxu0 0
    %85 = vmatprep.subr.bf16.mxu0 0
    %86 = vmatpush1.bf16.msra.mxu0 0
    %87 = vmatprep.subr.bf16.mxu0 0
    %88 = vmatpush1.bf16.msra.mxu0 0
    %89 = vmatprep.subr.bf16.mxu0 0
    %90 = vmatpush1.bf16.msra.mxu0 0
    %91 = vmatprep.subr.bf16.mxu0 0
    %92 = vmatpush1.bf16.msra.mxu0 0
    %93 = vmatprep.subr.bf16.mxu0 0
    %94 = vmatpush1.bf16.msra.mxu0 0
    %95 = vmatprep.subr.bf16.mxu0 0
    %96 = vmatpush1.bf16.msra.mxu0 0
    %97 = vmatprep.subr.bf16.mxu0 0
    %98 = vmatpush1.bf16.msra.mxu0 0
    %99 = vmatprep.subr.bf16.mxu0 0
    %100 = vmatpush1.bf16.msra.mxu0 0
    %101 = vmatprep.subr.bf16.mxu0 0
    %102 = vmatpush1.bf16.msra.mxu0 0
    %103 = vmatprep.subr.bf16.mxu0 0
    %104 = vmatpush1.bf16.msra.mxu0 0
    %105 = vmatprep.subr.bf16.mxu0 0
    %106 = vmatpush1.bf16.msra.mxu0 0
    %107 = vmatprep.subr.bf16.mxu0 0
    %108 = vmatpush1.bf16.msra.mxu0 0
    %109 = vmatprep.mubr.bf16.mxu0 0
    %110 = vmatmul.mubr.bf16.gmra.mrb[0].mxu0 %v75
    %v111 = vpop.f32.mrb[0].mxu0
    %v112 = vadd.f32 %v65, %v111
    %v113 = vpop.f32.mrb[0].mxu0
    %v114 = vpop.f32.mrb[0].mxu0
    %v115 = vadd.f32 %v65, %v114
    %v116 = vpop.f32.mrb[0].mxu0
    %117 = vdwg.mxu0
    %v118 = vmax.f32 %v112, 0.0
    %v119 = vmax.f32 %v115, 0.0
    %v120 = vpack.c.bf16 %v119, %v118
    %v121 = vld [vmem:[#allocation2] sm:$0xf]
    %v122 = vld [vmem:[#allocation2 + $0x4] sm:$0xf]
    %v123 = vld [vmem:[#allocation2 + $0x8] sm:$0xf]
    %v124 = vld [vmem:[#allocation2 + $0xc] sm:$0xf]
    %v125 = vld [vmem:[#allocation2 + $0x10] sm:$0xf]
    %v126 = vld [vmem:[#allocation2 + $0x14] sm:$0xf]
    %v127 = vld [vmem:[#allocation2 + $0x18] sm:$0xf]
    %v128 = vld [vmem:[#allocation2 + $0x1c] sm:$0xf]
    %v129 = vld [vmem:[#allocation2 + $0x20] sm:$0xf]
    %v130 = vld [vmem:[#allocation2 + $0x24] sm:$0xf]
    %v131 = vld [vmem:[#allocation2 + $0x28] sm:$0xf]
    %v132 = vld [vmem:[#allocation2 + $0x2c] sm:$0xf]
    %v133 = vld [vmem:[#allocation2 + $0x30] sm:$0xf]
    %v134 = vld [vmem:[#allocation2 + $0x34] sm:$0xf]
    %v135 = vld [vmem:[#allocation2 + $0x38] sm:$0xf]
    %v136 = vld [vmem:[#allocation2 + $0x3c] sm:$0xf]
    %v137 = vld [vmem:[%s4] sm:$0x1]
    %v139 = vlaneseq
    %v140 = vshrl.u32 %v139, 7
    %v141 = vsub.s32 0, %v140
    %v142 = vrot.slane %v137, %v141
    %v160 = vunpack.c.l.b16 %v121
    %v161 = vunpack.c.l.b16 %v122
    %v162 = vunpack.c.l.b16 %v123
    %v163 = vunpack.c.l.b16 %v124
    %v164 = vunpack.c.l.b16 %v125
    %v165 = vunpack.c.l.b16 %v126
    %v166 = vunpack.c.l.b16 %v127
    %v167 = vunpack.c.l.b16 %v128
    %v168 = vunpack.c.l.b16 %v129
    %v169 = vunpack.c.l.b16 %v130
    %v170 = vunpack.c.l.b16 %v131
    %v171 = vunpack.c.l.b16 %v132
    %v172 = vunpack.c.l.b16 %v133
    %v173 = vunpack.c.l.b16 %v134
    %v174 = vunpack.c.l.b16 %v135
    %v175 = vunpack.c.l.b16 %v136
    %v176 = vpack.c.b16 %v161, %v160
    %v177 = vpack.c.b16 %v163, %v162
    %v178 = vpack.c.b16 %v165, %v164
    %v179 = vpack.c.b16 %v167, %v166
    %v180 = vpack.c.b16 %v169, %v168
    %v181 = vpack.c.b16 %v171, %v170
    %v182 = vpack.c.b16 %v173, %v172
    %v183 = vpack.c.b16 %v175, %v174
    %192 = vmatprep.subr.bf16.mxu0 0
    %193 = vmatpush1.bf16.msra.mxu0 %v176
    %194 = vmatprep.subr.bf16.mxu0 0
    %195 = vmatpush1.bf16.msra.mxu0 %v177
    %196 = vmatprep.subr.bf16.mxu0 0
    %197 = vmatpush1.bf16.msra.mxu0 %v178
    %198 = vmatprep.subr.bf16.mxu0 0
    %199 = vmatpush1.bf16.msra.mxu0 %v179
    %200 = vmatprep.subr.bf16.mxu0 0
    %201 = vmatpush1.bf16.msra.mxu0 %v180
    %202 = vmatprep.subr.bf16.mxu0 0
    %203 = vmatpush1.bf16.msra.mxu0 %v181
    %204 = vmatprep.subr.bf16.mxu0 0
    %205 = vmatpush1.bf16.msra.mxu0 %v182
    %206 = vmatprep.subr.bf16.mxu0 0
    %207 = vmatpush1.bf16.msra.mxu0 %v183
    %208 = vmatprep.subr.bf16.mxu0 0
    %209 = vmatpush1.bf16.msra.mxu0 0
    %210 = vmatprep.subr.bf16.mxu0 0
    %211 = vmatpush1.bf16.msra.mxu0 0
    %212 = vmatprep.subr.bf16.mxu0 0
    %213 = vmatpush1.bf16.msra.mxu0 0
    %214 = vmatprep.subr.bf16.mxu0 0
    %215 = vmatpush1.bf16.msra.mxu0 0
    %216 = vmatprep.subr.bf16.mxu0 0
    %217 = vmatpush1.bf16.msra.mxu0 0
    %218 = vmatprep.subr.bf16.mxu0 0
    %219 = vmatpush1.bf16.msra.mxu0 0
    %220 = vmatprep.subr.bf16.mxu0 0
    %221 = vmatpush1.bf16.msra.mxu0 0
    %222 = vmatprep.subr.bf16.mxu0 0
    %223 = vmatpush1.bf16.msra.mxu0 0
    %224 = vmatprep.mubr.bf16.mxu0 0
    %225 = vmatmul.mubr.bf16.gmra.mrb[0].mxu0 %v120
    %v226 = vpop.f32.mrb[0].mxu0
    %v227 = vadd.f32 %v142, %v226
    %v228 = vpop.f32.mrb[0].mxu0
    %v229 = vpop.f32.mrb[0].mxu0
    %v230 = vadd.f32 %v142, %v229
    %v231 = vpop.f32.mrb[0].mxu0
    %232 = vdwg.mxu0
    %v233 = vmax.f32 %v227, 0.0
    %v234 = vmax.f32 %v230, 0.0
    %v235 = vpack.c.bf16 %v234, %v233
    %v236 = vld [vmem:[#allocation4] sm:$0xf]
    %v237 = vld [vmem:[#allocation4 + $0x4] sm:$0xf]
    %v238 = vld [vmem:[#allocation4 + $0x8] sm:$0xf]
    %v239 = vld [vmem:[#allocation4 + $0xc] sm:$0xf]
    %v240 = vld [vmem:[#allocation4 + $0x10] sm:$0xf]
    %v241 = vld [vmem:[#allocation4 + $0x14] sm:$0xf]
    %v242 = vld [vmem:[#allocation4 + $0x18] sm:$0xf]
    %v243 = vld [vmem:[#allocation4 + $0x1c] sm:$0xf]
    %v244 = vld [vmem:[#allocation4 + $0x20] sm:$0xf]
    %v245 = vld [vmem:[#allocation4 + $0x24] sm:$0xf]
    %v246 = vld [vmem:[#allocation4 + $0x28] sm:$0xf]
    %v247 = vld [vmem:[#allocation4 + $0x2c] sm:$0xf]
    %v248 = vld [vmem:[#allocation4 + $0x30] sm:$0xf]
    %v249 = vld [vmem:[#allocation4 + $0x34] sm:$0xf]
    %v250 = vld [vmem:[#allocation4 + $0x38] sm:$0xf]
    %v251 = vld [vmem:[#allocation4 + $0x3c] sm:$0xf]
    %v252 = vld [vmem:[%s6] sm:$0x1]
    %v254 = vlaneseq
    %v255 = vshrl.u32 %v254, 7
    %v256 = vsub.s32 0, %v255
    %v257 = vrot.slane %v252, %v256
    %v275 = vunpack.c.l.b16 %v236
    %v276 = vunpack.c.l.b16 %v237
    %v277 = vunpack.c.l.b16 %v238
    %v278 = vunpack.c.l.b16 %v239
    %v279 = vunpack.c.l.b16 %v240
    %v280 = vunpack.c.l.b16 %v241
    %v281 = vunpack.c.l.b16 %v242
    %v282 = vunpack.c.l.b16 %v243
    %v283 = vunpack.c.l.b16 %v244
    %v284 = vunpack.c.l.b16 %v245
    %v285 = vunpack.c.l.b16 %v246
    %v286 = vunpack.c.l.b16 %v247
    %v287 = vunpack.c.l.b16 %v248
    %v288 = vunpack.c.l.b16 %v249
    %v289 = vunpack.c.l.b16 %v250
    %v290 = vunpack.c.l.b16 %v251
    %v291 = vpack.c.b16 %v276, %v275
    %v292 = vpack.c.b16 %v278, %v277
    %v293 = vpack.c.b16 %v280, %v279
    %v294 = vpack.c.b16 %v282, %v281
    %v295 = vpack.c.b16 %v284, %v283
    %v296 = vpack.c.b16 %v286, %v285
    %v297 = vpack.c.b16 %v288, %v287
    %v298 = vpack.c.b16 %v290, %v289
    %307 = vmatprep.subr.bf16.mxu0 0
    %308 = vmatpush1.bf16.msra.mxu0 %v291
    %309 = vmatprep.subr.bf16.mxu0 0
    %310 = vmatpush1.bf16.msra.mxu0 %v292
    %311 = vmatprep.subr.bf16.mxu0 0
    %312 = vmatpush1.bf16.msra.mxu0 %v293
    %313 = vmatprep.subr.bf16.mxu0 0
    %314 = vmatpush1.bf16.msra.mxu0 %v294
    %315 = vmatprep.subr.bf16.mxu0 0
    %316 = vmatpush1.bf16.msra.mxu0 %v295
    %317 = vmatprep.subr.bf16.mxu0 0
    %318 = vmatpush1.bf16.msra.mxu0 %v296
    %319 = vmatprep.subr.bf16.mxu0 0
    %320 = vmatpush1.bf16.msra.mxu0 %v297
    %321 = vmatprep.subr.bf16.mxu0 0
    %322 = vmatpush1.bf16.msra.mxu0 %v298
    %323 = vmatprep.subr.bf16.mxu0 0
    %324 = vmatpush1.bf16.msra.mxu0 0
    %325 = vmatprep.subr.bf16.mxu0 0
    %326 = vmatpush1.bf16.msra.mxu0 0
    %327 = vmatprep.subr.bf16.mxu0 0
    %328 = vmatpush1.bf16.msra.mxu0 0
    %329 = vmatprep.subr.bf16.mxu0 0
    %330 = vmatpush1.bf16.msra.mxu0 0
    %331 = vmatprep.subr.bf16.mxu0 0
    %332 = vmatpush1.bf16.msra.mxu0 0
    %333 = vmatprep.subr.bf16.mxu0 0
    %334 = vmatpush1.bf16.msra.mxu0 0
    %335 = vmatprep.subr.bf16.mxu0 0
    %336 = vmatpush1.bf16.msra.mxu0 0
    %337 = vmatprep.subr.bf16.mxu0 0
    %338 = vmatpush1.bf16.msra.mxu0 0
    %339 = vmatprep.mubr.bf16.mxu0 0
    %340 = vmatmul.mubr.bf16.gmra.mrb[0].mxu0 %v235
    %v341 = vpop.f32.mrb[0].mxu0
    %v342 = vadd.f32 %v257, %v341
    %v343 = vpop.f32.mrb[0].mxu0
    %v344 = vpop.f32.mrb[0].mxu0
    %v345 = vadd.f32 %v257, %v344
    %v346 = vpop.f32.mrb[0].mxu0
    %347 = vdwg.mxu0
    %348 = vmax.xlane.f32.xlu0 %v342
    %v349 = vpop.xlane.xlu0 %348
    %350 = vmax.xlane.f32.xlu0 %v345
    %v351 = vpop.xlane.xlu0 %350
    %v352 = vsub.f32 %v342, %v349
    %v353 = vsub.f32 %v345, %v351
    %v354 = vmul.f32 %v352, 1.442695
    %v355 = vpow.pop %v354
    %v356 = vmul.f32 %v353, 1.442695
    %v357 = vpow.pop %v356
    %358 = vadd.xlane.f32.xlu0 %v355
    %v359 = vpop.xlane.xlu0 %358
    %360 = vadd.xlane.f32.xlu0 %v357
    %v361 = vpop.xlane.xlu0 %360
    %v362 = vrcp.pop %v359
    %v363 = vmul.f32 %v355, %v362
    %v364 = vrcp.pop %v361
    %v365 = vmul.f32 %v357, %v364
    %366 = vst [vmem:[%s7] sm:$0xff] %v363
    %367 = vst [vmem:[%s7 + $0x8] sm:$0xff] %v365
    // Predicated region
    $region38: #{baseline_discrete_actor.1} parent=1 // pred_check
      _
    $region39: #{baseline_discrete_actor.1} parent=1 // pred_check_branch
      %369 = sbr.rel (0) target = $region41
    $region40: #{baseline_discrete_actor.1} parent=1 // pred_region
      _
    $region41: #{baseline_discrete_actor.1} parent=1 // pred_fallthru
      _
    // Predicated region
    $region42: #{baseline_discrete_actor.1} parent=1 // pred_check
      _
    $region43: #{baseline_discrete_actor.1} parent=1 // pred_check_branch
      %371 = sbr.rel (0) target = $region45
    $region44: #{baseline_discrete_actor.1} parent=1 // pred_region
      _
    $region45: #{baseline_discrete_actor.1} parent=1 // pred_fallthru
      _
    %372 = vsyncpa [#allocation3], 1
    %373 = vsyncpa [#allocation5], 1

</llo_original>
